<compile_context>
chip_gen: v7x
topology: tpu7x:2x2x1
jax: 0.10.0
libtpu: 0.0.40
codegen_flags: <defaults>
</compile_context>

<pallas_src>
import functools

import jax
import jax.numpy as jnp
from jax.experimental import pallas as pl
from jax.experimental.pallas import tpu as pltpu

NB_ACTIONS = 4
NB_OBSERVATIONS = 8


def _round_up(n, m):
    return ((n + m - 1) // m) * m


def dueling_q_kernel(x_ref,
                     w1_ref, b1_ref,
                     w2_ref, b2_ref,
                     w3_ref, b3_ref,
                     wh_ref, bh_ref,
                     out_ref):
    """Feature-major fused forward pass.

    x_ref : (8, TB)   compute dtype (bf16 by default)
    wN    : (out, in) compute dtype       bN : (out, 1) float32
    wh/bh : fused dueling head (4, 32) / (4, 1)
    out   : (4, TB)   float32
    """
    cdt = x_ref.dtype

    # Trunk: Linear -> ReLU -> Linear -> ReLU -> Linear  (W @ x, f32 accumulation).
    h = jnp.dot(w1_ref[...], x_ref[...], preferred_element_type=jnp.float32)
    h = jnp.maximum(h + b1_ref[...], 0.0).astype(cdt)
    h = jnp.dot(w2_ref[...], h, preferred_element_type=jnp.float32)
    h = jnp.maximum(h + b2_ref[...], 0.0).astype(cdt)
    h = jnp.dot(w3_ref[...], h, preferred_element_type=jnp.float32)
    f = jnp.maximum(h + b3_ref[...], 0.0).astype(cdt)

    # Fused dueling head: V + A - mean(A) was folded into (wh, bh) at trace time,
    # so the whole epilogue is one small matmul + bias.
    out_ref[...] = (
        jnp.dot(wh_ref[...], f, preferred_element_type=jnp.float32) + bh_ref[...]
    )


@functools.partial(jax.jit, static_argnames=("tile_b", "compute_dtype"))
def dueling_q_forward(x, params, *, tile_b=2048, compute_dtype=jnp.bfloat16):
    """x: (B, nb_observations) float32 -> (B, nb_actions) float32."""
    B = x.shape[0]

    # Lane tile over the batch; pad B so every grid step is a full tile.
    tb = min(tile_b, _round_up(max(B, 1), 128))
    b_pad = _round_up(B, tb)
    grid = (b_pad // tb,)

    # Batch-on-lanes layout: (B, 8) -> (8, B_pad), zero-padded columns.
    xt = jnp.transpose(x)
    if b_pad != B:
        xt = jnp.pad(xt, ((0, 0), (0, b_pad - B)))
    xt = xt.astype(compute_dtype)

    # Fold the dueling combine (V + A - mean_A(A)) into a single head (exact).
    wa, ba = params["wa"], params["ba"]            # (4, 32), (4, 1)
    wv, bv = params["wv"], params["bv"]            # (1, 32), (1, 1)
    wh = wa + wv - jnp.mean(wa, axis=0, keepdims=True)      # (4, 32)
    bh = ba + bv - jnp.mean(ba, axis=0, keepdims=True)      # (4, 1)

    w1 = params["w1"].astype(compute_dtype); b1 = params["b1"]
    w2 = params["w2"].astype(compute_dtype); b2 = params["b2"]
    w3 = params["w3"].astype(compute_dtype); b3 = params["b3"]
    wh = wh.astype(compute_dtype)

    def const_spec(a):
        # Full-array block + constant index map -> stays VMEM-resident across steps.
        return pl.BlockSpec(a.shape, lambda i: (0,) * a.ndim)

    out_t = pl.pallas_call(
        dueling_q_kernel,
        out_shape=jax.ShapeDtypeStruct((NB_ACTIONS, b_pad), jnp.float32),
        grid=grid,
        in_specs=[
            pl.BlockSpec((NB_OBSERVATIONS, tb), lambda i: (0, i)),   # x tile
            const_spec(w1), const_spec(b1),
            const_spec(w2), const_spec(b2),
            const_spec(w3), const_spec(b3),
            const_spec(wh), const_spec(bh),
        ],
        out_specs=pl.BlockSpec((NB_ACTIONS, tb), lambda i: (0, i)),
        compiler_params=pltpu.CompilerParams(
            dimension_semantics=("parallel",)),
    )(xt, w1, b1, w2, b2, w3, b3, wh, bh)

    return jnp.transpose(out_t[:, :B])


def init_params(key):
    """PyTorch nn.Linear-style init, kept in (out, in) layout; biases as (out, 1)."""
    ks = jax.random.split(key, 10)

    def lin(kw, kb, fan_in, fan_out):
        scale = 1.0 / jnp.sqrt(jnp.float32(fan_in))
        w = jax.random.uniform(kw, (fan_out, fan_in), jnp.float32, -scale, scale)
        bias = jax.random.uniform(kb, (fan_out, 1), jnp.float32, -scale, scale)
        return w, bias

    w1, b1 = lin(ks[0], ks[1], NB_OBSERVATIONS, 128)
    w2, b2 = lin(ks[2], ks[3], 128, 64)
    w3, b3 = lin(ks[4], ks[5], 64, 32)
    wa, ba = lin(ks[6], ks[7], 32, NB_ACTIONS)
    wv, bv = lin(ks[8], ks[9], 32, 1)
    return dict(w1=w1, b1=b1, w2=w2, b2=b2, w3=w3, b3=b3,
                wa=wa, ba=ba, wv=wv, bv=bv)


def reference_forward(x, p):
    """Pure-JAX float32 reference mirroring the PyTorch module (unfused heads)."""
    h = jnp.maximum(x @ p["w1"].T + p["b1"].T, 0.0)
    h = jnp.maximum(h @ p["w2"].T + p["b2"].T, 0.0)
    h = h @ p["w3"].T + p["b3"].T
    f = jnp.maximum(h, 0.0)
    adv = f @ p["wa"].T + p["ba"].T
    val = f @ p["wv"].T + p["bv"].T
    return val + adv - jnp.mean(adv, axis=1, keepdims=True)


if __name__ == "__main__":
    key = jax.random.PRNGKey(0)
    k_params, k_x1, k_x2 = jax.random.split(key, 3)
    params = init_params(k_params)

    # Small demo batch.
    x = jax.random.normal(k_x1, (2, NB_OBSERVATIONS), dtype=jnp.float32)
    out = jax.block_until_ready(dueling_q_forward(x, params))
    ref = reference_forward(x, params)
    assert out.shape == (2, NB_ACTIONS)
    # bf16 MXU inputs with f32 accumulation -> compare at bf16-level tolerance.
    assert jnp.allclose(out, ref, atol=3e-2, rtol=3e-2), "mismatch vs reference (small batch)"

    # Batch that is not a multiple of the lane tile -> exercises the padding path.
    x2 = jax.random.normal(k_x2, (200, NB_OBSERVATIONS), dtype=jnp.float32)
    out2 = jax.block_until_ready(dueling_q_forward(x2, params))
    ref2 = reference_forward(x2, params)
    assert out2.shape == (200, NB_ACTIONS)
    assert jnp.allclose(out2, ref2, atol=3e-2, rtol=3e-2), "mismatch vs reference (padded batch)"

    print("KERNEL_OK")
</pallas_src>

<mosaic_0001>
module attributes {stable_mosaic.version = 11 : i64} {
  func.func @dueling_q_kernel(%arg0: i32, %arg1: memref<8x128xbf16, #tpu.memory_space<vmem>>, %arg2: memref<128x8xbf16, #tpu.memory_space<vmem>>, %arg3: memref<128x1xf32, #tpu.memory_space<vmem>>, %arg4: memref<64x128xbf16, #tpu.memory_space<vmem>>, %arg5: memref<64x1xf32, #tpu.memory_space<vmem>>, %arg6: memref<32x64xbf16, #tpu.memory_space<vmem>>, %arg7: memref<32x1xf32, #tpu.memory_space<vmem>>, %arg8: memref<4x32xbf16, #tpu.memory_space<vmem>>, %arg9: memref<4x1xf32, #tpu.memory_space<vmem>>, %arg10: memref<4x128xf32, #tpu.memory_space<vmem>>) attributes {dimension_semantics = [#tpu.dimension_semantics<parallel>], iteration_bounds = array<i64: 1>, scalar_prefetch = 0 : i64, scratch_operands = 0 : i64, tpu.core_type = #tpu.core_type<tc>, window_params = [{transform_indices = @transform_0, window_bounds = array<i64: 8, 128>}, {pipeline_mode = #tpu.pipeline_mode<synchronous>, transform_indices = @transform_1, window_bounds = array<i64: 128, 8>}, {pipeline_mode = #tpu.pipeline_mode<synchronous>, transform_indices = @transform_2, window_bounds = array<i64: 128, 1>}, {pipeline_mode = #tpu.pipeline_mode<synchronous>, transform_indices = @transform_3, window_bounds = array<i64: 64, 128>}, {pipeline_mode = #tpu.pipeline_mode<synchronous>, transform_indices = @transform_4, window_bounds = array<i64: 64, 1>}, {pipeline_mode = #tpu.pipeline_mode<synchronous>, transform_indices = @transform_5, window_bounds = array<i64: 32, 64>}, {pipeline_mode = #tpu.pipeline_mode<synchronous>, transform_indices = @transform_6, window_bounds = array<i64: 32, 1>}, {pipeline_mode = #tpu.pipeline_mode<synchronous>, transform_indices = @transform_7, window_bounds = array<i64: 4, 32>}, {pipeline_mode = #tpu.pipeline_mode<synchronous>, transform_indices = @transform_8, window_bounds = array<i64: 4, 1>}, {transform_indices = @transform_9, window_bounds = array<i64: 4, 128>}]} {
    %c0 = arith.constant 0 : index
    %c0_0 = arith.constant 0 : index
    %0 = vector.load %arg2[%c0, %c0_0] : memref<128x8xbf16, #tpu.memory_space<vmem>>, vector<128x8xbf16>
    %c0_1 = arith.constant 0 : index
    %c0_2 = arith.constant 0 : index
    %1 = vector.load %arg1[%c0_1, %c0_2] : memref<8x128xbf16, #tpu.memory_space<vmem>>, vector<8x128xbf16>
    %cst = arith.constant dense<0.000000e+00> : vector<128x128xf32>
    %2 = tpu.matmul %0, %1, %cst {dimension_numbers = #tpu.dot_dimension_numbers<[1], [0], [0], [1], [0, 0, 1, 1], [], []>} : vector<128x8xbf16>, vector<8x128xbf16>, vector<128x128xf32> -> vector<128x128xf32>
    %c0_3 = arith.constant 0 : index
    %c0_4 = arith.constant 0 : index
    %3 = vector.load %arg3[%c0_3, %c0_4] : memref<128x1xf32, #tpu.memory_space<vmem>>, vector<128x1xf32>
    %4 = vector.broadcast %3 : vector<128x1xf32> to vector<128x128xf32>
    %5 = arith.addf %2, %4 : vector<128x128xf32>
    %cst_5 = arith.constant 0.000000e+00 : f32
    %6 = vector.broadcast %cst_5 : f32 to vector<128x128xf32>
    %7 = arith.maximumf %5, %6 : vector<128x128xf32>
    %8 = arith.truncf %7 : vector<128x128xf32> to vector<128x128xbf16>
    %c0_6 = arith.constant 0 : index
    %c0_7 = arith.constant 0 : index
    %9 = vector.load %arg4[%c0_6, %c0_7] : memref<64x128xbf16, #tpu.memory_space<vmem>>, vector<64x128xbf16>
    %cst_8 = arith.constant dense<0.000000e+00> : vector<64x128xf32>
    %10 = tpu.matmul %9, %8, %cst_8 {dimension_numbers = #tpu.dot_dimension_numbers<[1], [0], [0], [1], [0, 0, 1, 1], [], []>} : vector<64x128xbf16>, vector<128x128xbf16>, vector<64x128xf32> -> vector<64x128xf32>
    %c0_9 = arith.constant 0 : index
    %c0_10 = arith.constant 0 : index
    %11 = vector.load %arg5[%c0_9, %c0_10] : memref<64x1xf32, #tpu.memory_space<vmem>>, vector<64x1xf32>
    %12 = vector.broadcast %11 : vector<64x1xf32> to vector<64x128xf32>
    %13 = arith.addf %10, %12 : vector<64x128xf32>
    %cst_11 = arith.constant 0.000000e+00 : f32
    %14 = vector.broadcast %cst_11 : f32 to vector<64x128xf32>
    %15 = arith.maximumf %13, %14 : vector<64x128xf32>
    %16 = arith.truncf %15 : vector<64x128xf32> to vector<64x128xbf16>
    %c0_12 = arith.constant 0 : index
    %c0_13 = arith.constant 0 : index
    %17 = vector.load %arg6[%c0_12, %c0_13] : memref<32x64xbf16, #tpu.memory_space<vmem>>, vector<32x64xbf16>
    %cst_14 = arith.constant dense<0.000000e+00> : vector<32x128xf32>
    %18 = tpu.matmul %17, %16, %cst_14 {dimension_numbers = #tpu.dot_dimension_numbers<[1], [0], [0], [1], [0, 0, 1, 1], [], []>} : vector<32x64xbf16>, vector<64x128xbf16>, vector<32x128xf32> -> vector<32x128xf32>
    %c0_15 = arith.constant 0 : index
    %c0_16 = arith.constant 0 : index
    %19 = vector.load %arg7[%c0_15, %c0_16] : memref<32x1xf32, #tpu.memory_space<vmem>>, vector<32x1xf32>
    %20 = vector.broadcast %19 : vector<32x1xf32> to vector<32x128xf32>
    %21 = arith.addf %18, %20 : vector<32x128xf32>
    %cst_17 = arith.constant 0.000000e+00 : f32
    %22 = vector.broadcast %cst_17 : f32 to vector<32x128xf32>
    %23 = arith.maximumf %21, %22 : vector<32x128xf32>
    %24 = arith.truncf %23 : vector<32x128xf32> to vector<32x128xbf16>
    %c0_18 = arith.constant 0 : index
    %c0_19 = arith.constant 0 : index
    %25 = vector.load %arg8[%c0_18, %c0_19] : memref<4x32xbf16, #tpu.memory_space<vmem>>, vector<4x32xbf16>
    %cst_20 = arith.constant dense<0.000000e+00> : vector<4x128xf32>
    %26 = tpu.matmul %25, %24, %cst_20 {dimension_numbers = #tpu.dot_dimension_numbers<[1], [0], [0], [1], [0, 0, 1, 1], [], []>} : vector<4x32xbf16>, vector<32x128xbf16>, vector<4x128xf32> -> vector<4x128xf32>
    %c0_21 = arith.constant 0 : index
    %c0_22 = arith.constant 0 : index
    %27 = vector.load %arg9[%c0_21, %c0_22] : memref<4x1xf32, #tpu.memory_space<vmem>>, vector<4x1xf32>
    %28 = vector.broadcast %27 : vector<4x1xf32> to vector<4x128xf32>
    %29 = arith.addf %26, %28 : vector<4x128xf32>
    %c0_23 = arith.constant 0 : index
    %c0_24 = arith.constant 0 : index
    %30 = vector.load %arg10[%c0_23, %c0_24] : memref<4x128xf32, #tpu.memory_space<vmem>>, vector<4x128xf32>
    tpu.vector_store %arg10[%c0_23, %c0_24], %29 {strides = array<i32>} : memref<4x128xf32, #tpu.memory_space<vmem>>, vector<4x128xf32>,
    return
  }
  func.func @transform_0(%arg0: i32) -> (i32, i32) {
    %c0_i32 = arith.constant 0 : i32
    %c0_i32_0 = arith.constant 0 : i32
    return %c0_i32, %arg0 : i32, i32
  }
  func.func @transform_1(%arg0: i32) -> (i32, i32) {
    %c0_i32 = arith.constant 0 : i32
    %c0_i32_0 = arith.constant 0 : i32
    %c0_i32_1 = arith.constant 0 : i32
    return %c0_i32, %c0_i32_0 : i32, i32
  }
  func.func @transform_2(%arg0: i32) -> (i32, i32) {
    %c0_i32 = arith.constant 0 : i32
    %c0_i32_0 = arith.constant 0 : i32
    %c0_i32_1 = arith.constant 0 : i32
    return %c0_i32, %c0_i32_0 : i32, i32
  }
  func.func @transform_3(%arg0: i32) -> (i32, i32) {
    %c0_i32 = arith.constant 0 : i32
    %c0_i32_0 = arith.constant 0 : i32
    %c0_i32_1 = arith.constant 0 : i32
    return %c0_i32, %c0_i32_0 : i32, i32
  }
  func.func @transform_4(%arg0: i32) -> (i32, i32) {
    %c0_i32 = arith.constant 0 : i32
    %c0_i32_0 = arith.constant 0 : i32
    %c0_i32_1 = arith.constant 0 : i32
    return %c0_i32, %c0_i32_0 : i32, i32
  }
  func.func @transform_5(%arg0: i32) -> (i32, i32) {
    %c0_i32 = arith.constant 0 : i32
    %c0_i32_0 = arith.constant 0 : i32
    %c0_i32_1 = arith.constant 0 : i32
    return %c0_i32, %c0_i32_0 : i32, i32
  }
  func.func @transform_6(%arg0: i32) -> (i32, i32) {
    %c0_i32 = arith.constant 0 : i32
    %c0_i32_0 = arith.constant 0 : i32
    %c0_i32_1 = arith.constant 0 : i32
    return %c0_i32, %c0_i32_0 : i32, i32
  }
  func.func @transform_7(%arg0: i32) -> (i32, i32) {
    %c0_i32 = arith.constant 0 : i32
    %c0_i32_0 = arith.constant 0 : i32
    %c0_i32_1 = arith.constant 0 : i32
    return %c0_i32, %c0_i32_0 : i32, i32
  }
  func.func @transform_8(%arg0: i32) -> (i32, i32) {
    %c0_i32 = arith.constant 0 : i32
    %c0_i32_0 = arith.constant 0 : i32
    %c0_i32_1 = arith.constant 0 : i32
    return %c0_i32, %c0_i32_0 : i32, i32
  }
  func.func @transform_9(%arg0: i32) -> (i32, i32) {
    %c0_i32 = arith.constant 0 : i32
    %c0_i32_0 = arith.constant 0 : i32
    return %c0_i32, %arg0 : i32, i32
  }
}

</mosaic_0001>

<llo_original>
// kernel: dueling_q_forward.1
$region0: #{dueling_q_forward.1}
  #allocation0 [shape = 'u32[]', space=smem, size = 0x4, offset = 0x4, fixed_abs, tag = 'smem constant byte address 0x4 - core index']
  #allocation1 [shape = 'u32[144,128]{1,0:T(1,128)}', space=vmem, size = 0x12000, scoped, tag = 'internal scratch']
  %s0 = inlined_call_operand.vmem [shape: bf16[8,128], index: 0, kind: input, shape index: {}]
  %s1 = inlined_call_operand.vmem [shape: bf16[128,8], index: 1, kind: input, shape index: {}]
  %s2 = inlined_call_operand.vmem [shape: f32[128,1], index: 2, kind: input, shape index: {}]
  %s3 = inlined_call_operand.vmem [shape: bf16[64,128], index: 3, kind: input, shape index: {}]
  %s4 = inlined_call_operand.vmem [shape: f32[64,1], index: 4, kind: input, shape index: {}]
  %s5 = inlined_call_operand.vmem [shape: bf16[32,64], index: 5, kind: input, shape index: {}]
  %s6 = inlined_call_operand.vmem [shape: f32[32,1], index: 6, kind: input, shape index: {}]
  %s7 = inlined_call_operand.vmem [shape: bf16[4,32], index: 7, kind: input, shape index: {}]
  %s8 = inlined_call_operand.vmem [shape: f32[4,1], index: 8, kind: input, shape index: {}]
  %s9 = inlined_call_operand.vmem [shape: f32[4,128], index: 9, kind: output, shape index: {}]
  %s10 = sld [smem:[#allocation0]]
  $region46: #{dueling_q_forward.1} parent=0
    _
  %s12 = ssub.s32 1, %s10
  %s13 = scalar_select 0, %s12, %s10
  // Predicated region
  $region2: #{dueling_q_forward.1} parent=0 // pred_check
    _
  $region3: #{dueling_q_forward.1} parent=0 // pred_check_branch
    %15 = sbr.rel (0) target = $region5
  $region4: #{dueling_q_forward.1} parent=0 // pred_region
    _
  $region5: #{dueling_q_forward.1} parent=0 // pred_fallthru
    _
  // Predicated region
  $region6: #{dueling_q_forward.1} parent=0 // pred_check
    _
  $region7: #{dueling_q_forward.1} parent=0 // pred_check_branch
    %17 = sbr.rel (0) target = $region9
  $region8: #{dueling_q_forward.1} parent=0 // pred_region
    _
  $region9: #{dueling_q_forward.1} parent=0 // pred_fallthru
    _
  // Predicated region
  $region10: #{dueling_q_forward.1} parent=0 // pred_check
    _
  $region11: #{dueling_q_forward.1} parent=0 // pred_check_branch
    %19 = sbr.rel (0) target = $region13
  $region12: #{dueling_q_forward.1} parent=0 // pred_region
    _
  $region13: #{dueling_q_forward.1} parent=0 // pred_fallthru
    _
  // Predicated region
  $region14: #{dueling_q_forward.1} parent=0 // pred_check
    _
  $region15: #{dueling_q_forward.1} parent=0 // pred_check_branch
    %21 = sbr.rel (0) target = $region17
  $region16: #{dueling_q_forward.1} parent=0 // pred_region
    _
  $region17: #{dueling_q_forward.1} parent=0 // pred_fallthru
    _
  // Predicated region
  $region18: #{dueling_q_forward.1} parent=0 // pred_check
    _
  $region19: #{dueling_q_forward.1} parent=0 // pred_check_branch
    %23 = sbr.rel (0) target = $region21
  $region20: #{dueling_q_forward.1} parent=0 // pred_region
    _
  $region21: #{dueling_q_forward.1} parent=0 // pred_fallthru
    _
  // Predicated region
  $region22: #{dueling_q_forward.1} parent=0 // pred_check
    _
  $region23: #{dueling_q_forward.1} parent=0 // pred_check_branch
    %25 = sbr.rel (0) target = $region25
  $region24: #{dueling_q_forward.1} parent=0 // pred_region
    _
  $region25: #{dueling_q_forward.1} parent=0 // pred_fallthru
    _
  // Predicated region
  $region26: #{dueling_q_forward.1} parent=0 // pred_check
    _
  $region27: #{dueling_q_forward.1} parent=0 // pred_check_branch
    %27 = sbr.rel (0) target = $region29
  $region28: #{dueling_q_forward.1} parent=0 // pred_region
    _
  $region29: #{dueling_q_forward.1} parent=0 // pred_fallthru
    _
  // Predicated region
  $region30: #{dueling_q_forward.1} parent=0 // pred_check
    _
  $region31: #{dueling_q_forward.1} parent=0 // pred_check_branch
    %29 = sbr.rel (0) target = $region33
  $region32: #{dueling_q_forward.1} parent=0 // pred_region
    _
  $region33: #{dueling_q_forward.1} parent=0 // pred_fallthru
    _
  // Predicated region
  $region34: #{dueling_q_forward.1} parent=0 // pred_check
    _
  $region35: #{dueling_q_forward.1} parent=0 // pred_check_branch
    %31 = sbr.rel (0) target = $region37
  $region36: #{dueling_q_forward.1} parent=0 // pred_region
    _
  $region37: #{dueling_q_forward.1} parent=0 // pred_fallthru
    _
  %v33 = vld [vmem:[%s1] sm:$0xf]
  %v34 = vld [vmem:[%s1 + $0x4] sm:$0xf]
  %v35 = vld [vmem:[%s1 + $0x8] sm:$0xf]
  %v36 = vld [vmem:[%s1 + $0xc] sm:$0xf]
  %v37 = vld [vmem:[%s1 + $0x10] sm:$0xf]
  %v38 = vld [vmem:[%s1 + $0x14] sm:$0xf]
  %v39 = vld [vmem:[%s1 + $0x18] sm:$0xf]
  %v40 = vld [vmem:[%s1 + $0x1c] sm:$0xf]
  %v41 = vld [vmem:[%s1 + $0x20] sm:$0xf]
  %v42 = vld [vmem:[%s1 + $0x24] sm:$0xf]
  %v43 = vld [vmem:[%s1 + $0x28] sm:$0xf]
  %v44 = vld [vmem:[%s1 + $0x2c] sm:$0xf]
  %v45 = vld [vmem:[%s1 + $0x30] sm:$0xf]
  %v46 = vld [vmem:[%s1 + $0x34] sm:$0xf]
  %v47 = vld [vmem:[%s1 + $0x38] sm:$0xf]
  %v48 = vld [vmem:[%s1 + $0x3c] sm:$0xf]
  %v49 = vld [vmem:[%s0] sm:$0xf]
  %v50 = vld [vmem:[%s2] sm:$0xff]
  %v51 = vld [vmem:[%s2 + $0x8] sm:$0xff]
  %v52 = vld [vmem:[%s2 + $0x10] sm:$0xff]
  %v53 = vld [vmem:[%s2 + $0x18] sm:$0xff]
  %v54 = vld [vmem:[%s2 + $0x20] sm:$0xff]
  %v55 = vld [vmem:[%s2 + $0x28] sm:$0xff]
  %v56 = vld [vmem:[%s2 + $0x30] sm:$0xff]
  %v57 = vld [vmem:[%s2 + $0x38] sm:$0xff]
  %v58 = vld [vmem:[%s2 + $0x40] sm:$0xff]
  %v59 = vld [vmem:[%s2 + $0x48] sm:$0xff]
  %v60 = vld [vmem:[%s2 + $0x50] sm:$0xff]
  %v61 = vld [vmem:[%s2 + $0x58] sm:$0xff]
  %v62 = vld [vmem:[%s2 + $0x60] sm:$0xff]
  %v63 = vld [vmem:[%s2 + $0x68] sm:$0xff]
  %v64 = vld [vmem:[%s2 + $0x70] sm:$0xff]
  %v65 = vld [vmem:[%s2 + $0x78] sm:$0xff]
  %67 = vset.pattern.permute.xlu0 0
  %68 = vperm.xlu0 %67, %v50
  %v69 = vpop.permute.xlu0 %68
  %72 = vset.pattern.permute.xlu0 0
  %73 = vperm.xlu0 %72, %v51
  %v74 = vpop.permute.xlu0 %73
  %77 = vset.pattern.permute.xlu0 0
  %78 = vperm.xlu0 %77, %v52
  %v79 = vpop.permute.xlu0 %78
  %82 = vset.pattern.permute.xlu0 0
  %83 = vperm.xlu0 %82, %v53
  %v84 = vpop.permute.xlu0 %83
  %87 = vset.pattern.permute.xlu0 0
  %88 = vperm.xlu0 %87, %v54
  %v89 = vpop.permute.xlu0 %88
  %92 = vset.pattern.permute.xlu0 0
  %93 = vperm.xlu0 %92, %v55
  %v94 = vpop.permute.xlu0 %93
  %97 = vset.pattern.permute.xlu0 0
  %98 = vperm.xlu0 %97, %v56
  %v99 = vpop.permute.xlu0 %98
  %102 = vset.pattern.permute.xlu0 0
  %103 = vperm.xlu0 %102, %v57
  %v104 = vpop.permute.xlu0 %103
  %107 = vset.pattern.permute.xlu0 0
  %108 = vperm.xlu0 %107, %v58
  %v109 = vpop.permute.xlu0 %108
  %112 = vset.pattern.permute.xlu0 0
  %113 = vperm.xlu0 %112, %v59
  %v114 = vpop.permute.xlu0 %113
  %117 = vset.pattern.permute.xlu0 0
  %118 = vperm.xlu0 %117, %v60
  %v119 = vpop.permute.xlu0 %118
  %122 = vset.pattern.permute.xlu0 0
  %123 = vperm.xlu0 %122, %v61
  %v124 = vpop.permute.xlu0 %123
  %127 = vset.pattern.permute.xlu0 0
  %128 = vperm.xlu0 %127, %v62
  %v129 = vpop.permute.xlu0 %128
  %132 = vset.pattern.permute.xlu0 0
  %133 = vperm.xlu0 %132, %v63
  %v134 = vpop.permute.xlu0 %133
  %137 = vset.pattern.permute.xlu0 0
  %138 = vperm.xlu0 %137, %v64
  %v139 = vpop.permute.xlu0 %138
  %142 = vset.pattern.permute.xlu0 0
  %143 = vperm.xlu0 %142, %v65
  %v144 = vpop.permute.xlu0 %143
  %v162 = vunpack.c.l.b16 %v33
  %v163 = vunpack.c.l.b16 %v34
  %v164 = vunpack.c.l.b16 %v35
  %v165 = vunpack.c.l.b16 %v36
  %v166 = vunpack.c.l.b16 %v37
  %v167 = vunpack.c.l.b16 %v38
  %v168 = vunpack.c.l.b16 %v39
  %v169 = vunpack.c.l.b16 %v40
  %v170 = vunpack.c.l.b16 %v41
  %v171 = vunpack.c.l.b16 %v42
  %v172 = vunpack.c.l.b16 %v43
  %v173 = vunpack.c.l.b16 %v44
  %v174 = vunpack.c.l.b16 %v45
  %v175 = vunpack.c.l.b16 %v46
  %v176 = vunpack.c.l.b16 %v47
  %v177 = vunpack.c.l.b16 %v48
  %v178 = vpack.c.b16 %v163, %v162
  %v179 = vpack.c.b16 %v165, %v164
  %v180 = vpack.c.b16 %v167, %v166
  %v181 = vpack.c.b16 %v169, %v168
  %v182 = vpack.c.b16 %v171, %v170
  %v183 = vpack.c.b16 %v173, %v172
  %v184 = vpack.c.b16 %v175, %v174
  %v185 = vpack.c.b16 %v177, %v176
  %vm186 = vcmask 64512
  %v188 = vsel %vm186, %v178, 0
  %v191 = vsel %vm186, %v179, 0
  %v194 = vsel %vm186, %v180, 0
  %v197 = vsel %vm186, %v181, 0
  %v200 = vsel %vm186, %v182, 0
  %v203 = vsel %vm186, %v183, 0
  %v206 = vsel %vm186, %v184, 0
  %v209 = vsel %vm186, %v185, 0
  %vm211 = vcmask 1043456
  %v213 = vsel %vm211, %v49, 0
  %215 = vmatprep.subr.bf16.mxu0 0
  %216 = vmatpush1.bf16.msra.mxu0 %v213
  %217 = vmatprep.subr.bf16.mxu0 0
  %218 = vmatpush1.bf16.msra.mxu0 0
  %219 = vmatprep.subr.bf16.mxu0 0
  %220 = vmatpush1.bf16.msra.mxu0 0
  %221 = vmatprep.subr.bf16.mxu0 0
  %222 = vmatpush1.bf16.msra.mxu0 0
  %223 = vmatprep.subr.bf16.mxu0 0
  %224 = vmatpush1.bf16.msra.mxu0 0
  %225 = vmatprep.subr.bf16.mxu0 0
  %226 = vmatpush1.bf16.msra.mxu0 0
  %227 = vmatprep.subr.bf16.mxu0 0
  %228 = vmatpush1.bf16.msra.mxu0 0
  %229 = vmatprep.subr.bf16.mxu0 0
  %230 = vmatpush1.bf16.msra.mxu0 0
  %231 = vmatprep.subr.bf16.mxu0 0
  %232 = vmatpush1.bf16.msra.mxu0 0
  %233 = vmatprep.subr.bf16.mxu0 0
  %234 = vmatpush1.bf16.msra.mxu0 0
  %235 = vmatprep.subr.bf16.mxu0 0
  %236 = vmatpush1.bf16.msra.mxu0 0
  %237 = vmatprep.subr.bf16.mxu0 0
  %238 = vmatpush1.bf16.msra.mxu0 0
  %239 = vmatprep.subr.bf16.mxu0 0
  %240 = vmatpush1.bf16.msra.mxu0 0
  %241 = vmatprep.subr.bf16.mxu0 0
  %242 = vmatpush1.bf16.msra.mxu0 0
  %243 = vmatprep.subr.bf16.mxu0 0
  %244 = vmatpush1.bf16.msra.mxu0 0
  %245 = vmatprep.subr.bf16.mxu0 0
  %246 = vmatpush1.bf16.msra.mxu0 0
  %247 = vmatprep.mubr.bf16.mxu0 0
  %248 = vmatmul.mubr.bf16.gmra.mrb[0].mxu0 %v188
  %v249 = vpop.f32.mrb[0].mxu0
  %v250 = vadd.f32 %v69, %v249
  %v251 = vpop.f32.mrb[0].mxu0
  %v252 = vpop.f32.mrb[0].mxu0
  %v253 = vadd.f32 %v74, %v252
  %v254 = vpop.f32.mrb[0].mxu0
  %255 = vmatprep.mubr.bf16.mxu0 0
  %256 = vmatmul.mubr.bf16.gmra.mrb[0].mxu0 %v191
  %v257 = vpop.f32.mrb[0].mxu0
  %v258 = vadd.f32 %v79, %v257
  %v259 = vpop.f32.mrb[0].mxu0
  %v260 = vpop.f32.mrb[0].mxu0
  %v261 = vadd.f32 %v84, %v260
  %v262 = vpop.f32.mrb[0].mxu0
  %263 = vmatprep.mubr.bf16.mxu0 0
  %264 = vmatmul.mubr.bf16.gmra.mrb[0].mxu0 %v194
  %v265 = vpop.f32.mrb[0].mxu0
  %v266 = vadd.f32 %v89, %v265
  %v267 = vpop.f32.mrb[0].mxu0
  %v268 = vpop.f32.mrb[0].mxu0
  %v269 = vadd.f32 %v94, %v268
  %v270 = vpop.f32.mrb[0].mxu0
  %271 = vmatprep.mubr.bf16.mxu0 0
  %272 = vmatmul.mubr.bf16.gmra.mrb[0].mxu0 %v197
  %v273 = vpop.f32.mrb[0].mxu0
  %v274 = vadd.f32 %v99, %v273
  %v275 = vpop.f32.mrb[0].mxu0
  %v276 = vpop.f32.mrb[0].mxu0
  %v277 = vadd.f32 %v104, %v276
  %v278 = vpop.f32.mrb[0].mxu0
  %279 = vmatprep.mubr.bf16.mxu0 0
  %280 = vmatmul.mubr.bf16.gmra.mrb[0].mxu0 %v200
  %v281 = vpop.f32.mrb[0].mxu0
  %v282 = vadd.f32 %v109, %v281
  %v283 = vpop.f32.mrb[0].mxu0
  %v284 = vpop.f32.mrb[0].mxu0
  %v285 = vadd.f32 %v114, %v284
  %v286 = vpop.f32.mrb[0].mxu0
  %287 = vmatprep.mubr.bf16.mxu0 0
  %288 = vmatmul.mubr.bf16.gmra.mrb[0].mxu0 %v203
  %v289 = vpop.f32.mrb[0].mxu0
  %v290 = vadd.f32 %v119, %v289
  %v291 = vpop.f32.mrb[0].mxu0
  %v292 = vpop.f32.mrb[0].mxu0
  %v293 = vadd.f32 %v124, %v292
  %v294 = vpop.f32.mrb[0].mxu0
  %295 = vmatprep.mubr.bf16.mxu0 0
  %296 = vmatmul.mubr.bf16.gmra.mrb[0].mxu0 %v206
  %v297 = vpop.f32.mrb[0].mxu0
  %v298 = vadd.f32 %v129, %v297
  %v299 = vpop.f32.mrb[0].mxu0
  %v300 = vpop.f32.mrb[0].mxu0
  %v301 = vadd.f32 %v134, %v300
  %v302 = vpop.f32.mrb[0].mxu0
  %303 = vmatprep.mubr.bf16.mxu0 0
  %304 = vmatmul.mubr.bf16.gmra.mrb[0].mxu0 %v209
  %v305 = vpop.f32.mrb[0].mxu0
  %v306 = vadd.f32 %v139, %v305
  %v307 = vpop.f32.mrb[0].mxu0
  %v308 = vpop.f32.mrb[0].mxu0
  %v309 = vadd.f32 %v144, %v308
  %v310 = vpop.f32.mrb[0].mxu0
  %311 = vdwg.mxu0
  %v312 = vmax.f32 %v250, 0.0
  %v313 = vmax.f32 %v253, 0.0
  %v314 = vmax.f32 %v258, 0.0
  %v315 = vmax.f32 %v261, 0.0
  %v316 = vmax.f32 %v266, 0.0
  %v317 = vmax.f32 %v269, 0.0
  %v318 = vmax.f32 %v274, 0.0
  %v319 = vmax.f32 %v277, 0.0
  %v320 = vmax.f32 %v282, 0.0
  %v321 = vmax.f32 %v285, 0.0
  %v322 = vmax.f32 %v290, 0.0
  %v323 = vmax.f32 %v293, 0.0
  %v324 = vmax.f32 %v298, 0.0
  %v325 = vmax.f32 %v301, 0.0
  %v326 = vmax.f32 %v306, 0.0
  %v327 = vmax.f32 %v309, 0.0
  %v328 = vpack.c.bf16 %v313, %v312
  %v329 = vpack.c.bf16 %v315, %v314
  %v330 = vpack.c.bf16 %v317, %v316
  %v331 = vpack.c.bf16 %v319, %v318
  %v332 = vpack.c.bf16 %v321, %v320
  %v333 = vpack.c.bf16 %v323, %v322
  %v334 = vpack.c.bf16 %v325, %v324
  %v335 = vpack.c.bf16 %v327, %v326
  %v336 = vld [vmem:[%s3] sm:$0xf]
  %v337 = vld [vmem:[%s3 + $0x4] sm:$0xf]
  %v338 = vld [vmem:[%s3 + $0x8] sm:$0xf]
  %v339 = vld [vmem:[%s3 + $0xc] sm:$0xf]
  %v340 = vld [vmem:[%s3 + $0x10] sm:$0xf]
  %v341 = vld [vmem:[%s3 + $0x14] sm:$0xf]
  %v342 = vld [vmem:[%s3 + $0x18] sm:$0xf]
  %v343 = vld [vmem:[%s3 + $0x1c] sm:$0xf]
  %v344 = vld [vmem:[%s4] sm:$0xff]
  %v345 = vld [vmem:[%s4 + $0x8] sm:$0xff]
  %v346 = vld [vmem:[%s4 + $0x10] sm:$0xff]
  %v347 = vld [vmem:[%s4 + $0x18] sm:$0xff]
  %v348 = vld [vmem:[%s4 + $0x20] sm:$0xff]
  %v349 = vld [vmem:[%s4 + $0x28] sm:$0xff]
  %v350 = vld [vmem:[%s4 + $0x30] sm:$0xff]
  %v351 = vld [vmem:[%s4 + $0x38] sm:$0xff]
  %353 = vset.pattern.permute.xlu0 0
  %354 = vperm.xlu0 %353, %v344
  %v355 = vpop.permute.xlu0 %354
  %358 = vset.pattern.permute.xlu0 0
  %359 = vperm.xlu0 %358, %v345
  %v360 = vpop.permute.xlu0 %359
  %363 = vset.pattern.permute.xlu0 0
  %364 = vperm.xlu0 %363, %v346
  %v365 = vpop.permute.xlu0 %364
  %368 = vset.pattern.permute.xlu0 0
  %369 = vperm.xlu0 %368, %v347
  %v370 = vpop.permute.xlu0 %369
  %373 = vset.pattern.permute.xlu0 0
  %374 = vperm.xlu0 %373, %v348
  %v375 = vpop.permute.xlu0 %374
  %378 = vset.pattern.permute.xlu0 0
  %379 = vperm.xlu0 %378, %v349
  %v380 = vpop.permute.xlu0 %379
  %383 = vset.pattern.permute.xlu0 0
  %384 = vperm.xlu0 %383, %v350
  %v385 = vpop.permute.xlu0 %384
  %388 = vset.pattern.permute.xlu0 0
  %389 = vperm.xlu0 %388, %v351
  %v390 = vpop.permute.xlu0 %389
  %v400 = vunpack.c.l.b16 %v336
  %v401 = vunpack.c.l.b16 %v337
  %v402 = vunpack.c.l.b16 %v338
  %v403 = vunpack.c.l.b16 %v339
  %v404 = vunpack.c.l.b16 %v340
  %v405 = vunpack.c.l.b16 %v341
  %v406 = vunpack.c.l.b16 %v342
  %v407 = vunpack.c.l.b16 %v343
  %v408 = vpack.c.b16 %v401, %v400
  %v409 = vpack.c.b16 %v403, %v402
  %v410 = vpack.c.b16 %v405, %v404
  %v411 = vpack.c.b16 %v407, %v406
  %416 = vmatprep.subr.bf16.mxu0 0
  %417 = vmatpush1.bf16.msra.mxu0 %v328
  %418 = vmatprep.subr.bf16.mxu0 0
  %419 = vmatpush1.bf16.msra.mxu0 %v329
  %420 = vmatprep.subr.bf16.mxu0 0
  %421 = vmatpush1.bf16.msra.mxu0 %v330
  %422 = vmatprep.subr.bf16.mxu0 0
  %423 = vmatpush1.bf16.msra.mxu0 %v331
  %424 = vmatprep.subr.bf16.mxu0 0
  %425 = vmatpush1.bf16.msra.mxu0 %v332
  %426 = vmatprep.subr.bf16.mxu0 0
  %427 = vmatpush1.bf16.msra.mxu0 %v333
  %428 = vmatprep.subr.bf16.mxu0 0
  %429 = vmatpush1.bf16.msra.mxu0 %v334
  %430 = vmatprep.subr.bf16.mxu0 0
  %431 = vmatpush1.bf16.msra.mxu0 %v335
  %432 = vmatprep.subr.bf16.mxu0 0
  %433 = vmatpush1.bf16.msra.mxu0 0
  %434 = vmatprep.subr.bf16.mxu0 0
  %435 = vmatpush1.bf16.msra.mxu0 0
  %436 = vmatprep.subr.bf16.mxu0 0
  %437 = vmatpush1.bf16.msra.mxu0 0
  %438 = vmatprep.subr.bf16.mxu0 0
  %439 = vmatpush1.bf16.msra.mxu0 0
  %440 = vmatprep.subr.bf16.mxu0 0
  %441 = vmatpush1.bf16.msra.mxu0 0
  %442 = vmatprep.subr.bf16.mxu0 0
  %443 = vmatpush1.bf16.msra.mxu0 0
  %444 = vmatprep.subr.bf16.mxu0 0
  %445 = vmatpush1.bf16.msra.mxu0 0
  %446 = vmatprep.subr.bf16.mxu0 0
  %447 = vmatpush1.bf16.msra.mxu0 0
  %448 = vmatprep.mubr.bf16.mxu0 0
  %449 = vmatmul.mubr.bf16.gmra.mrb[0].mxu0 %v408
  %v450 = vpop.f32.mrb[0].mxu0
  %v451 = vadd.f32 %v355, %v450
  %v452 = vpop.f32.mrb[0].mxu0
  %v453 = vpop.f32.mrb[0].mxu0
  %v454 = vadd.f32 %v360, %v453
  %v455 = vpop.f32.mrb[0].mxu0
  %456 = vmatprep.mubr.bf16.mxu0 0
  %457 = vmatmul.mubr.bf16.gmra.mrb[0].mxu0 %v409
  %v458 = vpop.f32.mrb[0].mxu0
  %v459 = vadd.f32 %v365, %v458
  %v460 = vpop.f32.mrb[0].mxu0
  %v461 = vpop.f32.mrb[0].mxu0
  %v462 = vadd.f32 %v370, %v461
  %v463 = vpop.f32.mrb[0].mxu0
  %464 = vmatprep.mubr.bf16.mxu0 0
  %465 = vmatmul.mubr.bf16.gmra.mrb[0].mxu0 %v410
  %v466 = vpop.f32.mrb[0].mxu0
  %v467 = vadd.f32 %v375, %v466
  %v468 = vpop.f32.mrb[0].mxu0
  %v469 = vpop.f32.mrb[0].mxu0
  %v470 = vadd.f32 %v380, %v469
  %v471 = vpop.f32.mrb[0].mxu0
  %472 = vmatprep.mubr.bf16.mxu0 0
  %473 = vmatmul.mubr.bf16.gmra.mrb[0].mxu0 %v411
  %v474 = vpop.f32.mrb[0].mxu0
  %v475 = vadd.f32 %v385, %v474
  %v476 = vpop.f32.mrb[0].mxu0
  %v477 = vpop.f32.mrb[0].mxu0
  %v478 = vadd.f32 %v390, %v477
  %v479 = vpop.f32.mrb[0].mxu0
  %480 = vdwg.mxu0
  %v481 = vmax.f32 %v451, 0.0
  %v482 = vmax.f32 %v454, 0.0
  %v483 = vmax.f32 %v459, 0.0
  %v484 = vmax.f32 %v462, 0.0
  %v485 = vmax.f32 %v467, 0.0
  %v486 = vmax.f32 %v470, 0.0
  %v487 = vmax.f32 %v475, 0.0
  %v488 = vmax.f32 %v478, 0.0
  %v489 = vpack.c.bf16 %v482, %v481
  %v490 = vpack.c.bf16 %v484, %v483
  %v491 = vpack.c.bf16 %v486, %v485
  %v492 = vpack.c.bf16 %v488, %v487
  %v493 = vld [vmem:[%s5] sm:$0xf]
  %v494 = vld [vmem:[%s5 + $0x4] sm:$0xf]
  %v495 = vld [vmem:[%s5 + $0x8] sm:$0xf]
  %v496 = vld [vmem:[%s5 + $0xc] sm:$0xf]
  %v497 = vld [vmem:[%s6] sm:$0xff]
  %v498 = vld [vmem:[%s6 + $0x8] sm:$0xff]
  %v499 = vld [vmem:[%s6 + $0x10] sm:$0xff]
  %v500 = vld [vmem:[%s6 + $0x18] sm:$0xff]
  %502 = vset.pattern.permute.xlu0 0
  %503 = vperm.xlu0 %502, %v497
  %v504 = vpop.permute.xlu0 %503
  %507 = vset.pattern.permute.xlu0 0
  %508 = vperm.xlu0 %507, %v498
  %v509 = vpop.permute.xlu0 %508
  %512 = vset.pattern.permute.xlu0 0
  %513 = vperm.xlu0 %512, %v499
  %v514 = vpop.permute.xlu0 %513
  %517 = vset.pattern.permute.xlu0 0
  %518 = vperm.xlu0 %517, %v500
  %v519 = vpop.permute.xlu0 %518
  %v525 = vunpack.c.l.b16 %v493
  %v526 = vunpack.c.l.b16 %v494
  %v527 = vunpack.c.l.b16 %v495
  %v528 = vunpack.c.l.b16 %v496
  %v529 = vpack.c.b16 %v526, %v525
  %v530 = vpack.c.b16 %v528, %v527
  %vm531 = vcmask 523264
  %v533 = vsel %vm531, %v529, 0
  %v536 = vsel %vm531, %v530, 0
  %538 = vmatprep.subr.bf16.mxu0 0
  %539 = vmatpush1.bf16.msra.mxu0 %v489
  %540 = vmatprep.subr.bf16.mxu0 0
  %541 = vmatpush1.bf16.msra.mxu0 %v490
  %542 = vmatprep.subr.bf16.mxu0 0
  %543 = vmatpush1.bf16.msra.mxu0 %v491
  %544 = vmatprep.subr.bf16.mxu0 0
  %545 = vmatpush1.bf16.msra.mxu0 %v492
  %546 = vmatprep.subr.bf16.mxu0 0
  %547 = vmatpush1.bf16.msra.mxu0 0
  %548 = vmatprep.subr.bf16.mxu0 0
  %549 = vmatpush1.bf16.msra.mxu0 0
  %550 = vmatprep.subr.bf16.mxu0 0
  %551 = vmatpush1.bf16.msra.mxu0 0
  %552 = vmatprep.subr.bf16.mxu0 0
  %553 = vmatpush1.bf16.msra.mxu0 0
  %554 = vmatprep.subr.bf16.mxu0 0
  %555 = vmatpush1.bf16.msra.mxu0 0
  %556 = vmatprep.subr.bf16.mxu0 0
  %557 = vmatpush1.bf16.msra.mxu0 0
  %558 = vmatprep.subr.bf16.mxu0 0
  %559 = vmatpush1.bf16.msra.mxu0 0
  %560 = vmatprep.subr.bf16.mxu0 0
  %561 = vmatpush1.bf16.msra.mxu0 0
  %562 = vmatprep.subr.bf16.mxu0 0
  %563 = vmatpush1.bf16.msra.mxu0 0
  %564 = vmatprep.subr.bf16.mxu0 0
  %565 = vmatpush1.bf16.msra.mxu0 0
  %566 = vmatprep.subr.bf16.mxu0 0
  %567 = vmatpush1.bf16.msra.mxu0 0
  %568 = vmatprep.subr.bf16.mxu0 0
  %569 = vmatpush1.bf16.msra.mxu0 0
  %570 = vmatprep.mubr.bf16.mxu0 0
  %571 = vmatmul.mubr.bf16.gmra.mrb[0].mxu0 %v533
  %v572 = vpop.f32.mrb[0].mxu0
  %v573 = vadd.f32 %v504, %v572
  %v574 = vpop.f32.mrb[0].mxu0
  %v575 = vpop.f32.mrb[0].mxu0
  %v576 = vadd.f32 %v509, %v575
  %v577 = vpop.f32.mrb[0].mxu0
  %578 = vmatprep.mubr.bf16.mxu0 0
  %579 = vmatmul.mubr.bf16.gmra.mrb[0].mxu0 %v536
  %v580 = vpop.f32.mrb[0].mxu0
  %v581 = vadd.f32 %v514, %v580
  %v582 = vpop.f32.mrb[0].mxu0
  %v583 = vpop.f32.mrb[0].mxu0
  %v584 = vadd.f32 %v519, %v583
  %v585 = vpop.f32.mrb[0].mxu0
  %586 = vdwg.mxu0
  %v587 = vmax.f32 %v573, 0.0
  %v588 = vmax.f32 %v576, 0.0
  %v589 = vmax.f32 %v581, 0.0
  %v590 = vmax.f32 %v584, 0.0
  %v591 = vpack.c.bf16 %v588, %v587
  %v592 = vpack.c.bf16 %v590, %v589
  %v593 = vld [vmem:[%s7] sm:$0x3]
  %v594 = vld [vmem:[%s8] sm:$0xf]
  %596 = vset.pattern.permute.xlu0 0
  %597 = vperm.xlu0 %596, %v594
  %v598 = vpop.permute.xlu0 %597
  %vm600 = vcmask 261120
  %v602 = vsel %vm600, %v593, 0
  %604 = vmatprep.subr.bf16.mxu0 0
  %605 = vmatpush1.bf16.msra.mxu0 %v591
  %606 = vmatprep.subr.bf16.mxu0 0
  %607 = vmatpush1.bf16.msra.mxu0 %v592
  %608 = vmatprep.subr.bf16.mxu0 0
  %609 = vmatpush1.bf16.msra.mxu0 0
  %610 = vmatprep.subr.bf16.mxu0 0
  %611 = vmatpush1.bf16.msra.mxu0 0
  %612 = vmatprep.subr.bf16.mxu0 0
  %613 = vmatpush1.bf16.msra.mxu0 0
  %614 = vmatprep.subr.bf16.mxu0 0
  %615 = vmatpush1.bf16.msra.mxu0 0
  %616 = vmatprep.subr.bf16.mxu0 0
  %617 = vmatpush1.bf16.msra.mxu0 0
  %618 = vmatprep.subr.bf16.mxu0 0
  %619 = vmatpush1.bf16.msra.mxu0 0
  %620 = vmatprep.subr.bf16.mxu0 0
  %621 = vmatpush1.bf16.msra.mxu0 0
  %622 = vmatprep.subr.bf16.mxu0 0
  %623 = vmatpush1.bf16.msra.mxu0 0
  %624 = vmatprep.subr.bf16.mxu0 0
  %625 = vmatpush1.bf16.msra.mxu0 0
  %626 = vmatprep.subr.bf16.mxu0 0
  %627 = vmatpush1.bf16.msra.mxu0 0
  %628 = vmatprep.subr.bf16.mxu0 0
  %629 = vmatpush1.bf16.msra.mxu0 0
  %630 = vmatprep.subr.bf16.mxu0 0
  %631 = vmatpush1.bf16.msra.mxu0 0
  %632 = vmatprep.subr.bf16.mxu0 0
  %633 = vmatpush1.bf16.msra.mxu0 0
  %634 = vmatprep.subr.bf16.mxu0 0
  %635 = vmatpush1.bf16.msra.mxu0 0
  %636 = vmatprep.mubr.bf16.mxu0 0
  %637 = vmatmul.mubr.bf16.gmra.mrb[0].mxu0 %v602
  %v638 = vpop.f32.mrb[0].mxu0
  %v639 = vadd.f32 %v598, %v638
  %v640 = vpop.f32.mrb[0].mxu0
  %v641 = vpop.f32.mrb[0].mxu0
  %v642 = vpop.f32.mrb[0].mxu0
  %643 = vdwg.mxu0
  %644 = vst [vmem:[%s9] sm:$0xf] %v639
  // Predicated region
  $region38: #{dueling_q_forward.1} parent=0 // pred_check
    _
  $region39: #{dueling_q_forward.1} parent=0 // pred_check_branch
    %646 = sbr.rel (0) target = $region41
  $region40: #{dueling_q_forward.1} parent=0 // pred_region
    _
  $region41: #{dueling_q_forward.1} parent=0 // pred_fallthru
    _
  // Predicated region
  $region42: #{dueling_q_forward.1} parent=0 // pred_check
    _
  $region43: #{dueling_q_forward.1} parent=0 // pred_check_branch
    %648 = sbr.rel (0) target = $region45
  $region44: #{dueling_q_forward.1} parent=0 // pred_region
    _
  $region45: #{dueling_q_forward.1} parent=0 // pred_fallthru
    _

</llo_original>
